<compile_context>
chip_gen: v5e
topology: v5e:2x2
jax: 0.10.0
libtpu: 0.0.40
codegen_flags: <defaults>
</compile_context>

<pallas_src>
import jax
import jax.numpy as jnp
from jax import lax
from jax.experimental import pallas as pl
from jax.experimental.pallas import tpu as pltpu

_EPS = 1e-12

# Below this total HBM traffic the Pallas launch/grid overhead dominates and
# XLA's fused add+rsqrt+mul is already near the HBM roofline.
_MIN_PALLAS_BYTES = 2 * 1024 * 1024


def _combiner_kernel(ref_ref, txt_ref, out_ref):
    # Upcast to f32: avoids bf16 precision loss in the squared-sum reduction
    # and keeps the eps clamp representable (1e-12 underflows to 0 in bf16).
    x = ref_ref[...].astype(jnp.float32) + txt_ref[...].astype(jnp.float32)
    sumsq = jnp.sum(x * x, axis=-1, keepdims=True)
    # Single rsqrt on the EUP instead of sqrt + divide; clamp sumsq vs eps^2
    # (mathematically identical to clamping the norm at eps).
    inv = lax.rsqrt(jnp.maximum(sumsq, jnp.float32(_EPS * _EPS)))
    out_ref[...] = (x * inv).astype(out_ref.dtype)


def _sublane(dtype):
    return {4: 8, 2: 16, 1: 32}.get(jnp.dtype(dtype).itemsize, 8)


def _round_down(x, m):
    return max(m, (x // m) * m)


def _round_up(x, m):
    return ((x + m - 1) // m) * m


def _tpu_vmem_bytes():
    try:
        return int(pltpu.get_tpu_info().vmem_capacity_bytes)
    except Exception:
        # Conservative fallback = v7x per-TensorCore VMEM.
        return 64 * 1024 * 1024


def _vmem_params():
    """Generation-aware (budget, vmem_limit, max_block_rows)."""
    vmem_cap = _tpu_vmem_bytes()
    # 128 MiB chips (v5e/v6e): 64 MiB scoped limit. 64 MiB chips (v7x): 40 MiB,
    # leaving headroom for Mosaic internal scratch.
    limit = min(64 * 1024 * 1024, (vmem_cap * 5) // 8)
    budget = limit // 2
    max_rows = 2048 if vmem_cap >= 96 * 1024 * 1024 else 1024
    return budget, limit, max_rows


def _pick_block_rows(B, D, dtype, budget_bytes, max_rows):
    itemsize = jnp.dtype(dtype).itemsize
    sub = _sublane(dtype)

    # Per-row VMEM cost of one grid step:
    #   3 refs x 2 buffers (double-buffered BlockSpec pipeline) at input dtype
    #   + ~2 f32 intermediates (x and x*inv materialize at f32 inside the tile).
    per_row = 6 * D * itemsize + 2 * D * 4
    rows = max(sub, budget_bytes // per_row)
    rows = min(rows, max_rows)
    rows = _round_down(rows, sub)
    rows = min(rows, _round_up(B, sub))

    # Enforce a minimum grid length so DMA overlaps compute: >= 2 steps always,
    # >= 4 steps when each of those steps still moves >= ~2 MiB of HBM traffic.
    max_steps = pl.cdiv(B, sub)
    min_steps = 4 if 3 * pl.cdiv(B, 4) * D * itemsize >= 2 * 1024 * 1024 else 2
    min_steps = min(min_steps, max_steps)
    if min_steps > 1:
        cap = _round_down(pl.cdiv(B, min_steps), sub)
        while cap > sub and pl.cdiv(B, cap) < min_steps:
            cap -= sub
        rows = min(rows, cap)

    # Prefer an even number of grid steps: with dimension_semantics="parallel"
    # v7x shards this axis across its two TensorCores, and an odd step count
    # leaves one core imbalanced. (Harmless no-op on single-core v5e/v6e.)
    steps = pl.cdiv(B, rows)
    if steps > 1 and steps % 2 == 1:
        r = rows
        for _ in range(16):
            r -= sub
            if r < sub:
                break
            if pl.cdiv(B, r) % 2 == 0:
                rows = r
                break
    return rows


def _combiner_jnp(ref_imgfeats, text_feats):
    # Same math as the kernel, for the tiny-input fast path.
    x = ref_imgfeats.astype(jnp.float32) + text_feats.astype(jnp.float32)
    sumsq = jnp.sum(x * x, axis=-1, keepdims=True)
    inv = lax.rsqrt(jnp.maximum(sumsq, jnp.float32(_EPS * _EPS)))
    return (x * inv).astype(ref_imgfeats.dtype)


def combiner(ref_imgfeats, text_feats, *, block_rows=None, force_pallas=False,
             donate_ref_imgfeats=False):
    """Pallas implementation of Combiner.forward.

    ref_imgfeats, text_feats: [B, D] arrays (same shape/dtype).
    Returns L2-normalized (along last dim) sum of the two.
    """
    assert ref_imgfeats.shape == text_feats.shape
    assert ref_imgfeats.dtype == text_feats.dtype
    B, D = ref_imgfeats.shape
    dtype = ref_imgfeats.dtype
    itemsize = jnp.dtype(dtype).itemsize

    # Tiny inputs: XLA-fused elementwise beats kernel launch + grid overhead.
    if not force_pallas and 3 * B * D * itemsize < _MIN_PALLAS_BYTES:
        return _combiner_jnp(ref_imgfeats, text_feats)

    budget, vmem_limit, max_rows = _vmem_params()
    if block_rows is None:
        block_rows = _pick_block_rows(B, D, dtype, budget, max_rows)

    grid = (pl.cdiv(B, block_rows),)
    # Only the batch axis is tiled; D stays whole as the last dim so the output
    # is lane-dense (unmasked full-width stores). Partial edge blocks (when
    # B % block_rows != 0) may compute on uninitialized padded rows (possibly
    # Inf/NaN, benign on TPU: no FP traps) and are masked off by Pallas on
    # writeback; each row's result depends only on that row, so padded rows
    # never feed real outputs. Do NOT "fix" this by removing the tiling.
    spec = pl.BlockSpec((block_rows, D), lambda i: (i, 0))

    cost = pl.CostEstimate(
        flops=4 * B * D,                       # add, square, reduce-add, scale
        transcendentals=B,                     # one rsqrt per row
        bytes_accessed=3 * B * D * itemsize,   # 2 reads + 1 write
    )

    # Safe to alias: each output block is written only after the corresponding
    # input block (same BlockSpec) has been read. Only enable when the caller
    # can actually donate ref_imgfeats' buffer.
    aliases = {0: 0} if donate_ref_imgfeats else {}

    return pl.pallas_call(
        _combiner_kernel,
        out_shape=jax.ShapeDtypeStruct((B, D), dtype),
        grid_spec=pltpu.PrefetchScalarGridSpec(
            num_scalar_prefetch=0,
            grid=grid,
            in_specs=[spec, spec],
            out_specs=spec,
        ),
        compiler_params=pltpu.CompilerParams(
            dimension_semantics=("parallel",),
            vmem_limit_bytes=vmem_limit,
        ),
        cost_estimate=cost,
        input_output_aliases=aliases,
    )(ref_imgfeats, text_feats)


def _reference(ref_imgfeats, text_feats):
    x = ref_imgfeats + text_feats
    norm = jnp.sqrt(jnp.sum(jnp.square(x), axis=-1, keepdims=True))
    return x / jnp.maximum(norm, 1e-12)


if __name__ == "__main__":
    key = jax.random.PRNGKey(0)
    k1, k2, k3, k4 = jax.random.split(key, 4)

    # 1) Pallas path, explicit tiling: CLIP-like feature dim, 4-step grid.
    B, D = 512, 512
    a = jax.random.normal(k1, (B, D), dtype=jnp.float32)
    b = jax.random.normal(k2, (B, D), dtype=jnp.float32)
    out = jax.block_until_ready(combiner(a, b, block_rows=128, force_pallas=True))
    exp = _reference(a, b)
    assert out.shape == (B, D)
    assert jnp.allclose(out, exp, atol=1e-5, rtol=1e-5), "mismatch (f32, tiled grid)"

    # 2) Pallas path, auto-picked tiling (exercises the >=2-step / even-step
    #    picker; for this shape it yields 2 pipelined, megacore-friendly steps).
    out_auto = jax.block_until_ready(combiner(a, b, force_pallas=True))
    assert jnp.allclose(out_auto, exp, atol=1e-5, rtol=1e-5), "mismatch (auto tiling)"

    # 3) Pallas path: non-divisible batch -> masked edge block.
    B2, D2 = 200, 256
    a2 = jax.random.normal(k3, (B2, D2), dtype=jnp.float32)
    b2 = jax.random.normal(k4, (B2, D2), dtype=jnp.float32)
    out2 = jax.block_until_ready(combiner(a2, b2, block_rows=64, force_pallas=True))
    exp2 = _reference(a2, b2)
    assert jnp.allclose(out2, exp2, atol=1e-5, rtol=1e-5), "mismatch (edge block)"

    # 4) Pallas path: bf16 inputs (f32 accumulation + eps clamp inside kernel).
    a3 = a.astype(jnp.bfloat16)
    b3 = b.astype(jnp.bfloat16)
    out3 = jax.block_until_ready(combiner(a3, b3, force_pallas=True))
    exp3 = _reference(a3.astype(jnp.float32), b3.astype(jnp.float32))
    assert jnp.allclose(out3.astype(jnp.float32), exp3, atol=2e-2, rtol=2e-2), "mismatch (bf16)"

    # 5) Tiny-input fast path (plain jnp, no Pallas launch).
    B4, D4 = 8, 64
    a4 = jax.random.normal(k1, (B4, D4), dtype=jnp.float32)
    b4 = jax.random.normal(k2, (B4, D4), dtype=jnp.float32)
    out4 = jax.block_until_ready(combiner(a4, b4))
    exp4 = _reference(a4, b4)
    assert jnp.allclose(out4, exp4, atol=1e-5, rtol=1e-5), "mismatch (tiny fallback)"

    print("KERNEL_OK")
</pallas_src>

<mosaic_0001>
module attributes {stable_mosaic.version = 11 : i64} {
  func.func @_combiner_kernel(%arg0: i32, %arg1: memref<128x512xf32, #tpu.memory_space<vmem>>, %arg2: memref<128x512xf32, #tpu.memory_space<vmem>>, %arg3: memref<128x512xf32, #tpu.memory_space<vmem>>) attributes {dimension_semantics = [#tpu.dimension_semantics<parallel>], iteration_bounds = array<i64: 4>, scalar_prefetch = 0 : i64, scratch_operands = 0 : i64, tpu.core_type = #tpu.core_type<tc>, window_params = [{transform_indices = @transform_0, window_bounds = array<i64: 128, 512>}, {transform_indices = @transform_1, window_bounds = array<i64: 128, 512>}, {transform_indices = @transform_2, window_bounds = array<i64: 128, 512>}]} {
    %c0 = arith.constant 0 : index
    %c0_0 = arith.constant 0 : index
    %0 = vector.load %arg1[%c0, %c0_0] : memref<128x512xf32, #tpu.memory_space<vmem>>, vector<128x512xf32>
    %c0_1 = arith.constant 0 : index
    %c0_2 = arith.constant 0 : index
    %1 = vector.load %arg2[%c0_1, %c0_2] : memref<128x512xf32, #tpu.memory_space<vmem>>, vector<128x512xf32>
    %2 = arith.addf %0, %1 : vector<128x512xf32>
    %3 = arith.mulf %2, %2 : vector<128x512xf32>
    %cst = arith.constant dense<0.000000e+00> : vector<128xf32>
    %4 = vector.multi_reduction <add>, %3, %cst [1] : vector<128x512xf32> to vector<128xf32>
    %5 = vector.shape_cast %4 : vector<128xf32> to vector<128x1xf32>
    %cst_3 = arith.constant 1.000000e-24 : f32
    %6 = vector.broadcast %cst_3 : f32 to vector<128x1xf32>
    %7 = arith.maximumf %5, %6 : vector<128x1xf32>
    %8 = math.rsqrt %7 : vector<128x1xf32>
    %9 = vector.broadcast %8 : vector<128x1xf32> to vector<128x512xf32>
    %10 = arith.mulf %2, %9 : vector<128x512xf32>
    %c0_4 = arith.constant 0 : index
    %c0_5 = arith.constant 0 : index
    %11 = vector.load %arg3[%c0_4, %c0_5] : memref<128x512xf32, #tpu.memory_space<vmem>>, vector<128x512xf32>
    tpu.vector_store %arg3[%c0_4, %c0_5], %10 {strides = array<i32>} : memref<128x512xf32, #tpu.memory_space<vmem>>, vector<128x512xf32>,
    return
  }
  func.func @transform_0(%arg0: i32) -> (i32, i32) {
    %c0_i32 = arith.constant 0 : i32
    %c0_i32_0 = arith.constant 0 : i32
    return %arg0, %c0_i32 : i32, i32
  }
  func.func @transform_1(%arg0: i32) -> (i32, i32) {
    %c0_i32 = arith.constant 0 : i32
    %c0_i32_0 = arith.constant 0 : i32
    return %arg0, %c0_i32 : i32, i32
  }
  func.func @transform_2(%arg0: i32) -> (i32, i32) {
    %c0_i32 = arith.constant 0 : i32
    %c0_i32_0 = arith.constant 0 : i32
    return %arg0, %c0_i32 : i32, i32
  }
}

</mosaic_0001>

<llo_original>
// kernel: tpu_custom_call.1
$region0: #{tpu_custom_call.1}
  #allocation0 [shape = 'u32[]', space=smem, size = 0x4, offset = 0x4, fixed_abs, tag = 'smem constant byte address 0x4 - core index']
  #allocation1 [shape = 'u32[72,128]{1,0:T(1,128)}', space=vmem, size = 0x9000, scoped, tag = 'internal scratch']
  %s0 = inlined_call_operand.hbm [shape: f32[512,512], index: 0, kind: input, shape index: {}]
  %s1 = inlined_call_operand.hbm [shape: f32[512,512], index: 1, kind: input, shape index: {}]
  %s2 = inlined_call_operand.hbm [shape: f32[512,512], index: 2, kind: output, shape index: {}]
  %s3 = sld [smem:[#allocation0]]
  $region49: #{tpu_custom_call.1} parent=0
    _
  %s5 = ssub.s32 1, %s3
  %s6 = scalar_select 0, %s5, %s3
  $region1: #{tpu_custom_call.1} parent=0
    #allocation2 [shape = 'u8[524288]{0}', space=vmem, size = 0x80000, scoped, tag = 'input window, operand 0']
    #allocation3 [shape = 's32[2]{0}', space=sflag, size = 0x8, scoped, tag = 'scoped memory for tpu_custom_call.1']
    #allocation4 [shape = 's32[2]{0}', space=sflag, size = 0x8, scoped, tag = 'scoped memory for tpu_custom_call.1']
    #allocation5 [shape = 'u8[524288]{0}', space=vmem, size = 0x80000, scoped, tag = 'input window, operand 1']
    #allocation6 [shape = 's32[2]{0}', space=sflag, size = 0x8, scoped, tag = 'scoped memory for tpu_custom_call.1']
    #allocation7 [shape = 'u8[524288]{0}', space=vmem, size = 0x80000, scoped, tag = 'output window, operand 0']
    %7 = vsyncpa [#allocation3], 0
    %s8 = scalar_lea.sflag [#allocation3], 1
    %9 = vsyncpa %s8, 0
    %10 = vsyncpa [#allocation6], 0
    %s11 = scalar_lea.sflag [#allocation6], 1
    %12 = vsyncpa %s11, 0
    %13 = vsyncpa [#allocation4], 0
    %s14 = scalar_lea.sflag [#allocation4], 1
    %15 = vsyncpa %s14, 0
    loop: start=0, step=1, limit=6
    $region2: #{tpu_custom_call.1} parent=1 // loop_pre_header
      _
    $region3: #{tpu_custom_call.1} parent=1 // loop_header
      %s17 = sphi 0, %s21
      %p18 = scmp.ge.s32.totalorder %s17, 6
      %s27 = sphi 0, %s29
      %s30 = sphi 0, %s27
      %s31 = sphi 0, %s30
      %s47 = sphi 0, %s31
      %s53 = sphi 0, %s55
      %s56 = sphi 0, %s53
      %s57 = sphi 0, %s56
      %s73 = sphi 0, %s57
      %s79 = sphi 0, %s81
      %s82 = sphi 0, %s79
      %s83 = sphi 0, %s82
      %s99 = sphi 0, %s83
    $region4: #{tpu_custom_call.1} parent=1 // loop_header_branch
      %20 = sbr.rel (%p18) target = $region8
    $region5: #{tpu_custom_call.1} parent=1 // loop_body
      %s22 = ssub.s32 %s17, 1
      %s23 = ssub.s32 %s17, 2
      %s24 = sadd.s32 %s17, 1
      %s25 = ssub.s32 %s17, %s24
      %p26 = scmp.eq.s32.totalorder %s25, 0
      %s28 = sadd.s32 %s27, 1
      %s29 = scalar_select %p26, %s27, %s28
      %p32 = pneg %p26
      %p33 = scmp.eq.s32.totalorder %s17, 3
      %p34 = por %p32, %p33
      %p35 = scmp.ne.s32.totalorder %s27, %s30
      %p36 = scmp.eq.s32.totalorder %s17, 0
      %p37 = por %p35, %p36
      %p38 = scmp.ne.s32.totalorder %s27, %s30
      %p39 = scmp.eq.s32.totalorder %s22, 3
      %p40 = por %p38, %p39
      %p41 = scmp.ne.s32.totalorder %s30, %s31
      %p42 = scmp.eq.s32.totalorder %s22, 0
      %p43 = por %p41, %p42
      %p44 = scmp.ne.s32.totalorder %s30, %s31
      %p45 = scmp.eq.s32.totalorder %s23, 3
      %p46 = por %p44, %p45
      %p48 = scmp.ne.s32.totalorder %s31, %s47
      %p49 = scmp.eq.s32.totalorder %s23, 0
      %p50 = por %p48, %p49
      %s51 = ssub.s32 %s17, %s24
      %p52 = scmp.eq.s32.totalorder %s51, 0
      %s54 = sadd.s32 %s53, 1
      %s55 = scalar_select %p52, %s53, %s54
      %p58 = pneg %p52
      %p59 = scmp.eq.s32.totalorder %s17, 3
      %p60 = por %p58, %p59
      %p61 = scmp.ne.s32.totalorder %s53, %s56
      %p62 = scmp.eq.s32.totalorder %s17, 0
      %p63 = por %p61, %p62
      %p64 = scmp.ne.s32.totalorder %s53, %s56
      %p65 = scmp.eq.s32.totalorder %s22, 3
      %p66 = por %p64, %p65
      %p67 = scmp.ne.s32.totalorder %s56, %s57
      %p68 = scmp.eq.s32.totalorder %s22, 0
      %p69 = por %p67, %p68
      %p70 = scmp.ne.s32.totalorder %s56, %s57
      %p71 = scmp.eq.s32.totalorder %s23, 3
      %p72 = por %p70, %p71
      %p74 = scmp.ne.s32.totalorder %s57, %s73
      %p75 = scmp.eq.s32.totalorder %s23, 0
      %p76 = por %p74, %p75
      %s77 = ssub.s32 %s17, %s24
      %p78 = scmp.eq.s32.totalorder %s77, 0
      %s80 = sadd.s32 %s79, 1
      %s81 = scalar_select %p78, %s79, %s80
      %p84 = pneg %p78
      %p85 = scmp.eq.s32.totalorder %s17, 3
      %p86 = por %p84, %p85
      %p87 = scmp.ne.s32.totalorder %s79, %s82
      %p88 = scmp.eq.s32.totalorder %s17, 0
      %p89 = por %p87, %p88
      %p90 = scmp.ne.s32.totalorder %s79, %s82
      %p91 = scmp.eq.s32.totalorder %s22, 3
      %p92 = por %p90, %p91
      %p93 = scmp.ne.s32.totalorder %s82, %s83
      %p94 = scmp.eq.s32.totalorder %s22, 0
      %p95 = por %p93, %p94
      %p96 = scmp.ne.s32.totalorder %s82, %s83
      %p97 = scmp.eq.s32.totalorder %s23, 3
      %p98 = por %p96, %p97
      %p100 = scmp.ne.s32.totalorder %s83, %s99
      %p101 = scmp.eq.s32.totalorder %s23, 0
      %p102 = por %p100, %p101
      %p103 = scmp.le.s32.totalorder 1, %s17
      %p104 = scmp.lt.s32.totalorder %s17, 5
      %p105 = pnand %p103, %p104
      %p106 = pneg %p105
      // Predicated region
      $region9: #{tpu_custom_call.1} parent=5 // pred_check
        _
      $region10: #{tpu_custom_call.1} parent=5 // pred_check_branch
        %108 = sbr.rel (%p105) target = $region12
      $region11: #{tpu_custom_call.1} parent=5 // pred_region
        %s109 = ssub.s32 %s17, 1
      $region12: #{tpu_custom_call.1} parent=5 // pred_fallthru
        _
      %p110 = scmp.lt.s32.totalorder %s17, 4
      // Predicated region
      $region13: #{tpu_custom_call.1} parent=5 // pred_check
        %p111 = pneg %p110
      $region14: #{tpu_custom_call.1} parent=5 // pred_check_branch
        %113 = sbr.rel (%p111) target = $region16
      $region15: #{tpu_custom_call.1} parent=5 // pred_region
        // Predicated region
        $region17: #{tpu_custom_call.1} parent=15 // pred_check
          %p114 = pneg %p37
        $region18: #{tpu_custom_call.1} parent=15 // pred_check_branch
          %116 = sbr.rel (%p114) target = $region20
        $region19: #{tpu_custom_call.1} parent=15 // pred_region
          %s117 = sand.u32 %s27, 1
          %s118 = scalar_lea.sflag [#allocation3], %s117
          %s119 = sand.u32 %s27, 1
          %s120 = smul.addr %s119, 512
          %s121 = scalar_lea.vmem [#allocation2], %s120
          %s122 = smul.u32 16, %s17
          %124 = vsyncadd %s118, 0
          %s125 = smul.addr %s122, 4
          %s126 = smul.addr %s125, 8
          %s127 = scalar_lea.hbm %s0, %s126
          %s128 = sshll.u32 %s127, 4
          %s129 = int_to_ptr.hbm [resolvable:$true] %s128
          %s130 = sshll.u32 %s121, 4
          %s131 = int_to_ptr.vmem [resolvable:$true] %s130
          %136 = dma.hbm_to_vmem [thread:$0]  %s129, 8192, %s131, %s118, 512, 512, 32
        $region20: #{tpu_custom_call.1} parent=15 // pred_fallthru
          _
        // Predicated region
        $region21: #{tpu_custom_call.1} parent=15 // pred_check
          %p137 = pneg %p63
        $region22: #{tpu_custom_call.1} parent=15 // pred_check_branch
          %139 = sbr.rel (%p137) target = $region24
        $region23: #{tpu_custom_call.1} parent=15 // pred_region
          %s140 = sand.u32 %s53, 1
          %s141 = scalar_lea.sflag [#allocation6], %s140
          %s142 = sand.u32 %s53, 1
          %s143 = smul.addr %s142, 512
          %s144 = scalar_lea.vmem [#allocation5], %s143
          %s145 = smul.u32 16, %s17
          %147 = vsyncadd %s141, 0
          %s148 = smul.addr %s145, 4
          %s149 = smul.addr %s148, 8
          %s150 = scalar_lea.hbm %s1, %s149
          %s151 = sshll.u32 %s150, 4
          %s152 = int_to_ptr.hbm [resolvable:$true] %s151
          %s153 = sshll.u32 %s144, 4
          %s154 = int_to_ptr.vmem [resolvable:$true] %s153
          %159 = dma.hbm_to_vmem [thread:$0]  %s152, 8192, %s154, %s141, 512, 512, 32
        $region24: #{tpu_custom_call.1} parent=15 // pred_fallthru
          _
      $region16: #{tpu_custom_call.1} parent=5 // pred_fallthru
        _
      %p160 = scmp.le.s32.totalorder 1, %s17
      %p161 = scmp.lt.s32.totalorder %s17, 5
      %p162 = pnand %p160, %p161
      %p163 = pneg %p162
      // Predicated region
      $region25: #{tpu_custom_call.1} parent=5 // pred_check
        _
      $region26: #{tpu_custom_call.1} parent=5 // pred_check_branch
        %165 = sbr.rel (%p162) target = $region28
      $region27: #{tpu_custom_call.1} parent=5 // pred_region
        %s166 = ssub.s32 %s17, 1
        %s167 = sand.u32 %s30, 1
        %s168 = scalar_lea.sflag [#allocation3], %s167
        %s169 = sand.u32 %s30, 1
        %s170 = smul.addr %s169, 512
        %s171 = scalar_lea.vmem [#allocation2], %s170
        // Predicated region
        $region29: #{tpu_custom_call.1} parent=27 // pred_check
          %p172 = pneg %p43
        $region30: #{tpu_custom_call.1} parent=27 // pred_check_branch
          %174 = sbr.rel (%p172) target = $region32
        $region31: #{tpu_custom_call.1} parent=27 // pred_region
          %176 = dma.done %s168, 8192
        $region32: #{tpu_custom_call.1} parent=27 // pred_fallthru
          _
        %s177 = sand.u32 %s56, 1
        %s178 = scalar_lea.sflag [#allocation6], %s177
        %s179 = sand.u32 %s56, 1
        %s180 = smul.addr %s179, 512
        %s181 = scalar_lea.vmem [#allocation5], %s180
        // Predicated region
        $region33: #{tpu_custom_call.1} parent=27 // pred_check
          %p182 = pneg %p69
        $region34: #{tpu_custom_call.1} parent=27 // pred_check_branch
          %184 = sbr.rel (%p182) target = $region36
        $region35: #{tpu_custom_call.1} parent=27 // pred_region
          %186 = dma.done %s178, 8192
        $region36: #{tpu_custom_call.1} parent=27 // pred_fallthru
          _
        %s187 = sand.u32 %s30, 1
        %s188 = scalar_lea.sflag [#allocation3], %s187
        %s189 = sand.u32 %s30, 1
        %s190 = smul.addr %s189, 512
        %s191 = scalar_lea.vmem [#allocation2], %s190
        %p192 = pneg %p43
        %p193 = pneg %p40
        %s194 = sand.u32 %s56, 1
        %s195 = scalar_lea.sflag [#allocation6], %s194
        %s196 = sand.u32 %s56, 1
        %s197 = smul.addr %s196, 512
        %s198 = scalar_lea.vmem [#allocation5], %s197
        %p199 = pneg %p69
        %p200 = pneg %p66
        %p201 = pneg %p95
        %p202 = pneg %p92
        %s203 = sand.u32 %s82, 1
        %s204 = scalar_lea.sflag [#allocation4], %s203
        %s205 = sand.u32 %s82, 1
        %s206 = smul.addr %s205, 512
        %s207 = scalar_lea.vmem [#allocation7], %s206
        %s208 = smul.u32 16, %s22
        %s209 = smul.u32 16, %s22
        %s210 = smul.u32 16, %s22
        %v211 = vld [vmem:[%s171] sm:$0xff]
        %v212 = vld [vmem:[%s171 + $0x8] sm:$0xff]
        %v213 = vld [vmem:[%s171 + $0x10] sm:$0xff]
        %v214 = vld [vmem:[%s171 + $0x18] sm:$0xff]
        %v215 = vld [vmem:[%s171 + $0x20] sm:$0xff]
        %v216 = vld [vmem:[%s171 + $0x28] sm:$0xff]
        %v217 = vld [vmem:[%s171 + $0x30] sm:$0xff]
        %v218 = vld [vmem:[%s171 + $0x38] sm:$0xff]
        %v219 = vld [vmem:[%s171 + $0x40] sm:$0xff]
        %v220 = vld [vmem:[%s171 + $0x48] sm:$0xff]
        %v221 = vld [vmem:[%s171 + $0x50] sm:$0xff]
        %v222 = vld [vmem:[%s171 + $0x58] sm:$0xff]
        %v223 = vld [vmem:[%s171 + $0x60] sm:$0xff]
        %v224 = vld [vmem:[%s171 + $0x68] sm:$0xff]
        %v225 = vld [vmem:[%s171 + $0x70] sm:$0xff]
        %v226 = vld [vmem:[%s171 + $0x78] sm:$0xff]
        %v227 = vld [vmem:[%s171 + $0x80] sm:$0xff]
        %v228 = vld [vmem:[%s171 + $0x88] sm:$0xff]
        %v229 = vld [vmem:[%s171 + $0x90] sm:$0xff]
        %v230 = vld [vmem:[%s171 + $0x98] sm:$0xff]
        %v231 = vld [vmem:[%s171 + $0xa0] sm:$0xff]
        %v232 = vld [vmem:[%s171 + $0xa8] sm:$0xff]
        %v233 = vld [vmem:[%s171 + $0xb0] sm:$0xff]
        %v234 = vld [vmem:[%s171 + $0xb8] sm:$0xff]
        %v235 = vld [vmem:[%s171 + $0xc0] sm:$0xff]
        %v236 = vld [vmem:[%s171 + $0xc8] sm:$0xff]
        %v237 = vld [vmem:[%s171 + $0xd0] sm:$0xff]
        %v238 = vld [vmem:[%s171 + $0xd8] sm:$0xff]
        %v239 = vld [vmem:[%s171 + $0xe0] sm:$0xff]
        %v240 = vld [vmem:[%s171 + $0xe8] sm:$0xff]
        %v241 = vld [vmem:[%s171 + $0xf0] sm:$0xff]
        %v242 = vld [vmem:[%s171 + $0xf8] sm:$0xff]
        %v243 = vld [vmem:[%s171 + $0x100] sm:$0xff]
        %v244 = vld [vmem:[%s171 + $0x108] sm:$0xff]
        %v245 = vld [vmem:[%s171 + $0x110] sm:$0xff]
        %v246 = vld [vmem:[%s171 + $0x118] sm:$0xff]
        %v247 = vld [vmem:[%s171 + $0x120] sm:$0xff]
        %v248 = vld [vmem:[%s171 + $0x128] sm:$0xff]
        %v249 = vld [vmem:[%s171 + $0x130] sm:$0xff]
        %v250 = vld [vmem:[%s171 + $0x138] sm:$0xff]
        %v251 = vld [vmem:[%s171 + $0x140] sm:$0xff]
        %v252 = vld [vmem:[%s171 + $0x148] sm:$0xff]
        %v253 = vld [vmem:[%s171 + $0x150] sm:$0xff]
        %v254 = vld [vmem:[%s171 + $0x158] sm:$0xff]
        %v255 = vld [vmem:[%s171 + $0x160] sm:$0xff]
        %v256 = vld [vmem:[%s171 + $0x168] sm:$0xff]
        %v257 = vld [vmem:[%s171 + $0x170] sm:$0xff]
        %v258 = vld [vmem:[%s171 + $0x178] sm:$0xff]
        %v259 = vld [vmem:[%s171 + $0x180] sm:$0xff]
        %v260 = vld [vmem:[%s171 + $0x188] sm:$0xff]
        %v261 = vld [vmem:[%s171 + $0x190] sm:$0xff]
        %v262 = vld [vmem:[%s171 + $0x198] sm:$0xff]
        %v263 = vld [vmem:[%s171 + $0x1a0] sm:$0xff]
        %v264 = vld [vmem:[%s171 + $0x1a8] sm:$0xff]
        %v265 = vld [vmem:[%s171 + $0x1b0] sm:$0xff]
        %v266 = vld [vmem:[%s171 + $0x1b8] sm:$0xff]
        %v267 = vld [vmem:[%s171 + $0x1c0] sm:$0xff]
        %v268 = vld [vmem:[%s171 + $0x1c8] sm:$0xff]
        %v269 = vld [vmem:[%s171 + $0x1d0] sm:$0xff]
        %v270 = vld [vmem:[%s171 + $0x1d8] sm:$0xff]
        %v271 = vld [vmem:[%s171 + $0x1e0] sm:$0xff]
        %v272 = vld [vmem:[%s171 + $0x1e8] sm:$0xff]
        %v273 = vld [vmem:[%s171 + $0x1f0] sm:$0xff]
        %v274 = vld [vmem:[%s171 + $0x1f8] sm:$0xff]
        %v275 = vld [vmem:[%s181] sm:$0xff]
        %v276 = vld [vmem:[%s181 + $0x8] sm:$0xff]
        %v277 = vld [vmem:[%s181 + $0x10] sm:$0xff]
        %v278 = vld [vmem:[%s181 + $0x18] sm:$0xff]
        %v279 = vld [vmem:[%s181 + $0x20] sm:$0xff]
        %v280 = vld [vmem:[%s181 + $0x28] sm:$0xff]
        %v281 = vld [vmem:[%s181 + $0x30] sm:$0xff]
        %v282 = vld [vmem:[%s181 + $0x38] sm:$0xff]
        %v283 = vld [vmem:[%s181 + $0x40] sm:$0xff]
        %v284 = vld [vmem:[%s181 + $0x48] sm:$0xff]
        %v285 = vld [vmem:[%s181 + $0x50] sm:$0xff]
        %v286 = vld [vmem:[%s181 + $0x58] sm:$0xff]
        %v287 = vld [vmem:[%s181 + $0x60] sm:$0xff]
        %v288 = vld [vmem:[%s181 + $0x68] sm:$0xff]
        %v289 = vld [vmem:[%s181 + $0x70] sm:$0xff]
        %v290 = vld [vmem:[%s181 + $0x78] sm:$0xff]
        %v291 = vld [vmem:[%s181 + $0x80] sm:$0xff]
        %v292 = vld [vmem:[%s181 + $0x88] sm:$0xff]
        %v293 = vld [vmem:[%s181 + $0x90] sm:$0xff]
        %v294 = vld [vmem:[%s181 + $0x98] sm:$0xff]
        %v295 = vld [vmem:[%s181 + $0xa0] sm:$0xff]
        %v296 = vld [vmem:[%s181 + $0xa8] sm:$0xff]
        %v297 = vld [vmem:[%s181 + $0xb0] sm:$0xff]
        %v298 = vld [vmem:[%s181 + $0xb8] sm:$0xff]
        %v299 = vld [vmem:[%s181 + $0xc0] sm:$0xff]
        %v300 = vld [vmem:[%s181 + $0xc8] sm:$0xff]
        %v301 = vld [vmem:[%s181 + $0xd0] sm:$0xff]
        %v302 = vld [vmem:[%s181 + $0xd8] sm:$0xff]
        %v303 = vld [vmem:[%s181 + $0xe0] sm:$0xff]
        %v304 = vld [vmem:[%s181 + $0xe8] sm:$0xff]
        %v305 = vld [vmem:[%s181 + $0xf0] sm:$0xff]
        %v306 = vld [vmem:[%s181 + $0xf8] sm:$0xff]
        %v307 = vld [vmem:[%s181 + $0x100] sm:$0xff]
        %v308 = vld [vmem:[%s181 + $0x108] sm:$0xff]
        %v309 = vld [vmem:[%s181 + $0x110] sm:$0xff]
        %v310 = vld [vmem:[%s181 + $0x118] sm:$0xff]
        %v311 = vld [vmem:[%s181 + $0x120] sm:$0xff]
        %v312 = vld [vmem:[%s181 + $0x128] sm:$0xff]
        %v313 = vld [vmem:[%s181 + $0x130] sm:$0xff]
        %v314 = vld [vmem:[%s181 + $0x138] sm:$0xff]
        %v315 = vld [vmem:[%s181 + $0x140] sm:$0xff]
        %v316 = vld [vmem:[%s181 + $0x148] sm:$0xff]
        %v317 = vld [vmem:[%s181 + $0x150] sm:$0xff]
        %v318 = vld [vmem:[%s181 + $0x158] sm:$0xff]
        %v319 = vld [vmem:[%s181 + $0x160] sm:$0xff]
        %v320 = vld [vmem:[%s181 + $0x168] sm:$0xff]
        %v321 = vld [vmem:[%s181 + $0x170] sm:$0xff]
        %v322 = vld [vmem:[%s181 + $0x178] sm:$0xff]
        %v323 = vld [vmem:[%s181 + $0x180] sm:$0xff]
        %v324 = vld [vmem:[%s181 + $0x188] sm:$0xff]
        %v325 = vld [vmem:[%s181 + $0x190] sm:$0xff]
        %v326 = vld [vmem:[%s181 + $0x198] sm:$0xff]
        %v327 = vld [vmem:[%s181 + $0x1a0] sm:$0xff]
        %v328 = vld [vmem:[%s181 + $0x1a8] sm:$0xff]
        %v329 = vld [vmem:[%s181 + $0x1b0] sm:$0xff]
        %v330 = vld [vmem:[%s181 + $0x1b8] sm:$0xff]
        %v331 = vld [vmem:[%s181 + $0x1c0] sm:$0xff]
        %v332 = vld [vmem:[%s181 + $0x1c8] sm:$0xff]
        %v333 = vld [vmem:[%s181 + $0x1d0] sm:$0xff]
        %v334 = vld [vmem:[%s181 + $0x1d8] sm:$0xff]
        %v335 = vld [vmem:[%s181 + $0x1e0] sm:$0xff]
        %v336 = vld [vmem:[%s181 + $0x1e8] sm:$0xff]
        %v337 = vld [vmem:[%s181 + $0x1f0] sm:$0xff]
        %v338 = vld [vmem:[%s181 + $0x1f8] sm:$0xff]
        %v339 = vadd.f32 %v211, %v275
        %v340 = vadd.f32 %v212, %v276
        %v341 = vadd.f32 %v213, %v277
        %v342 = vadd.f32 %v214, %v278
        %v343 = vadd.f32 %v215, %v279
        %v344 = vadd.f32 %v216, %v280
        %v345 = vadd.f32 %v217, %v281
        %v346 = vadd.f32 %v218, %v282
        %v347 = vadd.f32 %v219, %v283
        %v348 = vadd.f32 %v220, %v284
        %v349 = vadd.f32 %v221, %v285
        %v350 = vadd.f32 %v222, %v286
        %v351 = vadd.f32 %v223, %v287
        %v352 = vadd.f32 %v224, %v288
        %v353 = vadd.f32 %v225, %v289
        %v354 = vadd.f32 %v226, %v290
        %v355 = vadd.f32 %v227, %v291
        %v356 = vadd.f32 %v228, %v292
        %v357 = vadd.f32 %v229, %v293
        %v358 = vadd.f32 %v230, %v294
        %v359 = vadd.f32 %v231, %v295
        %v360 = vadd.f32 %v232, %v296
        %v361 = vadd.f32 %v233, %v297
        %v362 = vadd.f32 %v234, %v298
        %v363 = vadd.f32 %v235, %v299
        %v364 = vadd.f32 %v236, %v300
        %v365 = vadd.f32 %v237, %v301
        %v366 = vadd.f32 %v238, %v302
        %v367 = vadd.f32 %v239, %v303
        %v368 = vadd.f32 %v240, %v304
        %v369 = vadd.f32 %v241, %v305
        %v370 = vadd.f32 %v242, %v306
        %v371 = vadd.f32 %v243, %v307
        %v372 = vadd.f32 %v244, %v308
        %v373 = vadd.f32 %v245, %v309
        %v374 = vadd.f32 %v246, %v310
        %v375 = vadd.f32 %v247, %v311
        %v376 = vadd.f32 %v248, %v312
        %v377 = vadd.f32 %v249, %v313
        %v378 = vadd.f32 %v250, %v314
        %v379 = vadd.f32 %v251, %v315
        %v380 = vadd.f32 %v252, %v316
        %v381 = vadd.f32 %v253, %v317
        %v382 = vadd.f32 %v254, %v318
        %v383 = vadd.f32 %v255, %v319
        %v384 = vadd.f32 %v256, %v320
        %v385 = vadd.f32 %v257, %v321
        %v386 = vadd.f32 %v258, %v322
        %v387 = vadd.f32 %v259, %v323
        %v388 = vadd.f32 %v260, %v324
        %v389 = vadd.f32 %v261, %v325
        %v390 = vadd.f32 %v262, %v326
        %v391 = vadd.f32 %v263, %v327
        %v392 = vadd.f32 %v264, %v328
        %v393 = vadd.f32 %v265, %v329
        %v394 = vadd.f32 %v266, %v330
        %v395 = vadd.f32 %v267, %v331
        %v396 = vadd.f32 %v268, %v332
        %v397 = vadd.f32 %v269, %v333
        %v398 = vadd.f32 %v270, %v334
        %v399 = vadd.f32 %v271, %v335
        %v400 = vadd.f32 %v272, %v336
        %v401 = vadd.f32 %v273, %v337
        %v402 = vadd.f32 %v274, %v338
        %v403 = vmul.f32 %v339, %v339
        %v404 = vmul.f32 %v340, %v340
        %v405 = vmul.f32 %v341, %v341
        %v406 = vmul.f32 %v342, %v342
        %v407 = vmul.f32 %v343, %v343
        %v408 = vmul.f32 %v344, %v344
        %v409 = vmul.f32 %v345, %v345
        %v410 = vmul.f32 %v346, %v346
        %v411 = vmul.f32 %v347, %v347
        %v412 = vmul.f32 %v348, %v348
        %v413 = vmul.f32 %v349, %v349
        %v414 = vmul.f32 %v350, %v350
        %v415 = vmul.f32 %v351, %v351
        %v416 = vmul.f32 %v352, %v352
        %v417 = vmul.f32 %v353, %v353
        %v418 = vmul.f32 %v354, %v354
        %v419 = vmul.f32 %v355, %v355
        %v420 = vmul.f32 %v356, %v356
        %v421 = vmul.f32 %v357, %v357
        %v422 = vmul.f32 %v358, %v358
        %v423 = vmul.f32 %v359, %v359
        %v424 = vmul.f32 %v360, %v360
        %v425 = vmul.f32 %v361, %v361
        %v426 = vmul.f32 %v362, %v362
        %v427 = vmul.f32 %v363, %v363
        %v428 = vmul.f32 %v364, %v364
        %v429 = vmul.f32 %v365, %v365
        %v430 = vmul.f32 %v366, %v366
        %v431 = vmul.f32 %v367, %v367
        %v432 = vmul.f32 %v368, %v368
        %v433 = vmul.f32 %v369, %v369
        %v434 = vmul.f32 %v370, %v370
        %v435 = vmul.f32 %v371, %v371
        %v436 = vmul.f32 %v372, %v372
        %v437 = vmul.f32 %v373, %v373
        %v438 = vmul.f32 %v374, %v374
        %v439 = vmul.f32 %v375, %v375
        %v440 = vmul.f32 %v376, %v376
        %v441 = vmul.f32 %v377, %v377
        %v442 = vmul.f32 %v378, %v378
        %v443 = vmul.f32 %v379, %v379
        %v444 = vmul.f32 %v380, %v380
        %v445 = vmul.f32 %v381, %v381
        %v446 = vmul.f32 %v382, %v382
        %v447 = vmul.f32 %v383, %v383
        %v448 = vmul.f32 %v384, %v384
        %v449 = vmul.f32 %v385, %v385
        %v450 = vmul.f32 %v386, %v386
        %v451 = vmul.f32 %v387, %v387
        %v452 = vmul.f32 %v388, %v388
        %v453 = vmul.f32 %v389, %v389
        %v454 = vmul.f32 %v390, %v390
        %v455 = vmul.f32 %v391, %v391
        %v456 = vmul.f32 %v392, %v392
        %v457 = vmul.f32 %v393, %v393
        %v458 = vmul.f32 %v394, %v394
        %v459 = vmul.f32 %v395, %v395
        %v460 = vmul.f32 %v396, %v396
        %v461 = vmul.f32 %v397, %v397
        %v462 = vmul.f32 %v398, %v398
        %v463 = vmul.f32 %v399, %v399
        %v464 = vmul.f32 %v400, %v400
        %v465 = vmul.f32 %v401, %v401
        %v466 = vmul.f32 %v402, %v402
        %v467 = vadd.f32 %v403, %v404
        %v468 = vadd.f32 %v467, %v405
        %v469 = vadd.f32 %v468, %v406
        %470 = vadd.xlane.f32.xlu0 %v469
        %v471 = vpop.xlane.xlu0 %470
        %v472 = vadd.f32 %v407, %v408
        %v473 = vadd.f32 %v472, %v409
        %v474 = vadd.f32 %v473, %v410
        %475 = vadd.xlane.f32.xlu0 %v474
        %v476 = vpop.xlane.xlu0 %475
        %v477 = vadd.f32 %v411, %v412
        %v478 = vadd.f32 %v477, %v413
        %v479 = vadd.f32 %v478, %v414
        %480 = vadd.xlane.f32.xlu0 %v479
        %v481 = vpop.xlane.xlu0 %480
        %v482 = vadd.f32 %v415, %v416
        %v483 = vadd.f32 %v482, %v417
        %v484 = vadd.f32 %v483, %v418
        %485 = vadd.xlane.f32.xlu0 %v484
        %v486 = vpop.xlane.xlu0 %485
        %v487 = vadd.f32 %v419, %v420
        %v488 = vadd.f32 %v487, %v421
        %v489 = vadd.f32 %v488, %v422
        %490 = vadd.xlane.f32.xlu0 %v489
        %v491 = vpop.xlane.xlu0 %490
        %v492 = vadd.f32 %v423, %v424
        %v493 = vadd.f32 %v492, %v425
        %v494 = vadd.f32 %v493, %v426
        %495 = vadd.xlane.f32.xlu0 %v494
        %v496 = vpop.xlane.xlu0 %495
        %v497 = vadd.f32 %v427, %v428
        %v498 = vadd.f32 %v497, %v429
        %v499 = vadd.f32 %v498, %v430
        %500 = vadd.xlane.f32.xlu0 %v499
        %v501 = vpop.xlane.xlu0 %500
        %v502 = vadd.f32 %v431, %v432
        %v503 = vadd.f32 %v502, %v433
        %v504 = vadd.f32 %v503, %v434
        %505 = vadd.xlane.f32.xlu0 %v504
        %v506 = vpop.xlane.xlu0 %505
        %v507 = vadd.f32 %v435, %v436
        %v508 = vadd.f32 %v507, %v437
        %v509 = vadd.f32 %v508, %v438
        %510 = vadd.xlane.f32.xlu0 %v509
        %v511 = vpop.xlane.xlu0 %510
        %v512 = vadd.f32 %v439, %v440
        %v513 = vadd.f32 %v512, %v441
        %v514 = vadd.f32 %v513, %v442
        %515 = vadd.xlane.f32.xlu0 %v514
        %v516 = vpop.xlane.xlu0 %515
        %v517 = vadd.f32 %v443, %v444
        %v518 = vadd.f32 %v517, %v445
        %v519 = vadd.f32 %v518, %v446
        %520 = vadd.xlane.f32.xlu0 %v519
        %v521 = vpop.xlane.xlu0 %520
        %v522 = vadd.f32 %v447, %v448
        %v523 = vadd.f32 %v522, %v449
        %v524 = vadd.f32 %v523, %v450
        %525 = vadd.xlane.f32.xlu0 %v524
        %v526 = vpop.xlane.xlu0 %525
        %v527 = vadd.f32 %v451, %v452
        %v528 = vadd.f32 %v527, %v453
        %v529 = vadd.f32 %v528, %v454
        %530 = vadd.xlane.f32.xlu0 %v529
        %v531 = vpop.xlane.xlu0 %530
        %v532 = vadd.f32 %v455, %v456
        %v533 = vadd.f32 %v532, %v457
        %v534 = vadd.f32 %v533, %v458
        %535 = vadd.xlane.f32.xlu0 %v534
        %v536 = vpop.xlane.xlu0 %535
        %v537 = vadd.f32 %v459, %v460
        %v538 = vadd.f32 %v537, %v461
        %v539 = vadd.f32 %v538, %v462
        %540 = vadd.xlane.f32.xlu0 %v539
        %v541 = vpop.xlane.xlu0 %540
        %v542 = vadd.f32 %v463, %v464
        %v543 = vadd.f32 %v542, %v465
        %v544 = vadd.f32 %v543, %v466
        %545 = vadd.xlane.f32.xlu0 %v544
        %v546 = vpop.xlane.xlu0 %545
        %v547 = vmax.f32 %v471, 1e-24
        %v548 = vmax.f32 %v476, 1e-24
        %v549 = vmax.f32 %v481, 1e-24
        %v550 = vmax.f32 %v486, 1e-24
        %v551 = vmax.f32 %v491, 1e-24
        %v552 = vmax.f32 %v496, 1e-24
        %v553 = vmax.f32 %v501, 1e-24
        %v554 = vmax.f32 %v506, 1e-24
        %v555 = vmax.f32 %v511, 1e-24
        %v556 = vmax.f32 %v516, 1e-24
        %v557 = vmax.f32 %v521, 1e-24
        %v558 = vmax.f32 %v526, 1e-24
        %v559 = vmax.f32 %v531, 1e-24
        %v560 = vmax.f32 %v536, 1e-24
        %v561 = vmax.f32 %v541, 1e-24
        %v562 = vmax.f32 %v546, 1e-24
        %v563 = vrsqrt.pop %v547
        %v564 = vmul.f32 %v563, %v547
        %v565 = vmul.f32 %v564, %v563
        %v566 = vmul.f32 0.5, %v565
        %v567 = vsub.f32 1.5, %v566
        %v568 = vmul.f32 %v563, %v567
        %vm569 = vweird.f32 %v547
        %vm570 = vweird.f32 %v563
        %vm571 = vmor %vm569, %vm570
        %v572 = vsel %vm571, %v563, %v568
        %v573 = vrsqrt.pop %v548
        %v574 = vmul.f32 %v573, %v548
        %v575 = vmul.f32 %v574, %v573
        %v576 = vmul.f32 0.5, %v575
        %v577 = vsub.f32 1.5, %v576
        %v578 = vmul.f32 %v573, %v577
        %vm579 = vweird.f32 %v548
        %vm580 = vweird.f32 %v573
        %vm581 = vmor %vm579, %vm580
        %v582 = vsel %vm581, %v573, %v578
        %v583 = vrsqrt.pop %v549
        %v584 = vmul.f32 %v583, %v549
        %v585 = vmul.f32 %v584, %v583
        %v586 = vmul.f32 0.5, %v585
        %v587 = vsub.f32 1.5, %v586
        %v588 = vmul.f32 %v583, %v587
        %vm589 = vweird.f32 %v549
        %vm590 = vweird.f32 %v583
        %vm591 = vmor %vm589, %vm590
        %v592 = vsel %vm591, %v583, %v588
        %v593 = vrsqrt.pop %v550
        %v594 = vmul.f32 %v593, %v550
        %v595 = vmul.f32 %v594, %v593
        %v596 = vmul.f32 0.5, %v595
        %v597 = vsub.f32 1.5, %v596
        %v598 = vmul.f32 %v593, %v597
        %vm599 = vweird.f32 %v550
        %vm600 = vweird.f32 %v593
        %vm601 = vmor %vm599, %vm600
        %v602 = vsel %vm601, %v593, %v598
        %v603 = vrsqrt.pop %v551
        %v604 = vmul.f32 %v603, %v551
        %v605 = vmul.f32 %v604, %v603
        %v606 = vmul.f32 0.5, %v605
        %v607 = vsub.f32 1.5, %v606
        %v608 = vmul.f32 %v603, %v607
        %vm609 = vweird.f32 %v551
        %vm610 = vweird.f32 %v603
        %vm611 = vmor %vm609, %vm610
        %v612 = vsel %vm611, %v603, %v608
        %v613 = vrsqrt.pop %v552
        %v614 = vmul.f32 %v613, %v552
        %v615 = vmul.f32 %v614, %v613
        %v616 = vmul.f32 0.5, %v615
        %v617 = vsub.f32 1.5, %v616
        %v618 = vmul.f32 %v613, %v617
        %vm619 = vweird.f32 %v552
        %vm620 = vweird.f32 %v613
        %vm621 = vmor %vm619, %vm620
        %v622 = vsel %vm621, %v613, %v618
        %v623 = vrsqrt.pop %v553
        %v624 = vmul.f32 %v623, %v553
        %v625 = vmul.f32 %v624, %v623
        %v626 = vmul.f32 0.5, %v625
        %v627 = vsub.f32 1.5, %v626
        %v628 = vmul.f32 %v623, %v627
        %vm629 = vweird.f32 %v553
        %vm630 = vweird.f32 %v623
        %vm631 = vmor %vm629, %vm630
        %v632 = vsel %vm631, %v623, %v628
        %v633 = vrsqrt.pop %v554
        %v634 = vmul.f32 %v633, %v554
        %v635 = vmul.f32 %v634, %v633
        %v636 = vmul.f32 0.5, %v635
        %v637 = vsub.f32 1.5, %v636
        %v638 = vmul.f32 %v633, %v637
        %vm639 = vweird.f32 %v554
        %vm640 = vweird.f32 %v633
        %vm641 = vmor %vm639, %vm640
        %v642 = vsel %vm641, %v633, %v638
        %v643 = vrsqrt.pop %v555
        %v644 = vmul.f32 %v643, %v555
        %v645 = vmul.f32 %v644, %v643
        %v646 = vmul.f32 0.5, %v645
        %v647 = vsub.f32 1.5, %v646
        %v648 = vmul.f32 %v643, %v647
        %vm649 = vweird.f32 %v555
        %vm650 = vweird.f32 %v643
        %vm651 = vmor %vm649, %vm650
        %v652 = vsel %vm651, %v643, %v648
        %v653 = vrsqrt.pop %v556
        %v654 = vmul.f32 %v653, %v556
        %v655 = vmul.f32 %v654, %v653
        %v656 = vmul.f32 0.5, %v655
        %v657 = vsub.f32 1.5, %v656
        %v658 = vmul.f32 %v653, %v657
        %vm659 = vweird.f32 %v556
        %vm660 = vweird.f32 %v653
        %vm661 = vmor %vm659, %vm660
        %v662 = vsel %vm661, %v653, %v658
        %v663 = vrsqrt.pop %v557
        %v664 = vmul.f32 %v663, %v557
        %v665 = vmul.f32 %v664, %v663
        %v666 = vmul.f32 0.5, %v665
        %v667 = vsub.f32 1.5, %v666
        %v668 = vmul.f32 %v663, %v667
        %vm669 = vweird.f32 %v557
        %vm670 = vweird.f32 %v663
        %vm671 = vmor %vm669, %vm670
        %v672 = vsel %vm671, %v663, %v668
        %v673 = vrsqrt.pop %v558
        %v674 = vmul.f32 %v673, %v558
        %v675 = vmul.f32 %v674, %v673
        %v676 = vmul.f32 0.5, %v675
        %v677 = vsub.f32 1.5, %v676
        %v678 = vmul.f32 %v673, %v677
        %vm679 = vweird.f32 %v558
        %vm680 = vweird.f32 %v673
        %vm681 = vmor %vm679, %vm680
        %v682 = vsel %vm681, %v673, %v678
        %v683 = vrsqrt.pop %v559
        %v684 = vmul.f32 %v683, %v559
        %v685 = vmul.f32 %v684, %v683
        %v686 = vmul.f32 0.5, %v685
        %v687 = vsub.f32 1.5, %v686
        %v688 = vmul.f32 %v683, %v687
        %vm689 = vweird.f32 %v559
        %vm690 = vweird.f32 %v683
        %vm691 = vmor %vm689, %vm690
        %v692 = vsel %vm691, %v683, %v688
        %v693 = vrsqrt.pop %v560
        %v694 = vmul.f32 %v693, %v560
        %v695 = vmul.f32 %v694, %v693
        %v696 = vmul.f32 0.5, %v695
        %v697 = vsub.f32 1.5, %v696
        %v698 = vmul.f32 %v693, %v697
        %vm699 = vweird.f32 %v560
        %vm700 = vweird.f32 %v693
        %vm701 = vmor %vm699, %vm700
        %v702 = vsel %vm701, %v693, %v698
        %v703 = vrsqrt.pop %v561
        %v704 = vmul.f32 %v703, %v561
        %v705 = vmul.f32 %v704, %v703
        %v706 = vmul.f32 0.5, %v705
        %v707 = vsub.f32 1.5, %v706
        %v708 = vmul.f32 %v703, %v707
        %vm709 = vweird.f32 %v561
        %vm710 = vweird.f32 %v703
        %vm711 = vmor %vm709, %vm710
        %v712 = vsel %vm711, %v703, %v708
        %v713 = vrsqrt.pop %v562
        %v714 = vmul.f32 %v713, %v562
        %v715 = vmul.f32 %v714, %v713
        %v716 = vmul.f32 0.5, %v715
        %v717 = vsub.f32 1.5, %v716
        %v718 = vmul.f32 %v713, %v717
        %vm719 = vweird.f32 %v562
        %vm720 = vweird.f32 %v713
        %vm721 = vmor %vm719, %vm720
        %v722 = vsel %vm721, %v713, %v718
        %v723 = vmul.f32 %v339, %v572
        %v724 = vmul.f32 %v340, %v572
        %v725 = vmul.f32 %v341, %v572
        %v726 = vmul.f32 %v342, %v572
        %v727 = vmul.f32 %v343, %v582
        %v728 = vmul.f32 %v344, %v582
        %v729 = vmul.f32 %v345, %v582
        %v730 = vmul.f32 %v346, %v582
        %v731 = vmul.f32 %v347, %v592
        %v732 = vmul.f32 %v348, %v592
        %v733 = vmul.f32 %v349, %v592
        %v734 = vmul.f32 %v350, %v592
        %v735 = vmul.f32 %v351, %v602
        %v736 = vmul.f32 %v352, %v602
        %v737 = vmul.f32 %v353, %v602
        %v738 = vmul.f32 %v354, %v602
        %v739 = vmul.f32 %v355, %v612
        %v740 = vmul.f32 %v356, %v612
        %v741 = vmul.f32 %v357, %v612
        %v742 = vmul.f32 %v358, %v612
        %v743 = vmul.f32 %v359, %v622
        %v744 = vmul.f32 %v360, %v622
        %v745 = vmul.f32 %v361, %v622
        %v746 = vmul.f32 %v362, %v622
        %v747 = vmul.f32 %v363, %v632
        %v748 = vmul.f32 %v364, %v632
        %v749 = vmul.f32 %v365, %v632
        %v750 = vmul.f32 %v366, %v632
        %v751 = vmul.f32 %v367, %v642
        %v752 = vmul.f32 %v368, %v642
        %v753 = vmul.f32 %v369, %v642
        %v754 = vmul.f32 %v370, %v642
        %v755 = vmul.f32 %v371, %v652
        %v756 = vmul.f32 %v372, %v652
        %v757 = vmul.f32 %v373, %v652
        %v758 = vmul.f32 %v374, %v652
        %v759 = vmul.f32 %v375, %v662
        %v760 = vmul.f32 %v376, %v662
        %v761 = vmul.f32 %v377, %v662
        %v762 = vmul.f32 %v378, %v662
        %v763 = vmul.f32 %v379, %v672
        %v764 = vmul.f32 %v380, %v672
        %v765 = vmul.f32 %v381, %v672
        %v766 = vmul.f32 %v382, %v672
        %v767 = vmul.f32 %v383, %v682
        %v768 = vmul.f32 %v384, %v682
        %v769 = vmul.f32 %v385, %v682
        %v770 = vmul.f32 %v386, %v682
        %v771 = vmul.f32 %v387, %v692
        %v772 = vmul.f32 %v388, %v692
        %v773 = vmul.f32 %v389, %v692
        %v774 = vmul.f32 %v390, %v692
        %v775 = vmul.f32 %v391, %v702
        %v776 = vmul.f32 %v392, %v702
        %v777 = vmul.f32 %v393, %v702
        %v778 = vmul.f32 %v394, %v702
        %v779 = vmul.f32 %v395, %v712
        %v780 = vmul.f32 %v396, %v712
        %v781 = vmul.f32 %v397, %v712
        %v782 = vmul.f32 %v398, %v712
        %v783 = vmul.f32 %v399, %v722
        %v784 = vmul.f32 %v400, %v722
        %v785 = vmul.f32 %v401, %v722
        %v786 = vmul.f32 %v402, %v722
        %787 = vst [vmem:[%s207] sm:$0xff] %v723
        %788 = vst [vmem:[%s207 + $0x8] sm:$0xff] %v724
        %789 = vst [vmem:[%s207 + $0x10] sm:$0xff] %v725
        %790 = vst [vmem:[%s207 + $0x18] sm:$0xff] %v726
        %791 = vst [vmem:[%s207 + $0x20] sm:$0xff] %v727
        %792 = vst [vmem:[%s207 + $0x28] sm:$0xff] %v728
        %793 = vst [vmem:[%s207 + $0x30] sm:$0xff] %v729
        %794 = vst [vmem:[%s207 + $0x38] sm:$0xff] %v730
        %795 = vst [vmem:[%s207 + $0x40] sm:$0xff] %v731
        %796 = vst [vmem:[%s207 + $0x48] sm:$0xff] %v732
        %797 = vst [vmem:[%s207 + $0x50] sm:$0xff] %v733
        %798 = vst [vmem:[%s207 + $0x58] sm:$0xff] %v734
        %799 = vst [vmem:[%s207 + $0x60] sm:$0xff] %v735
        %800 = vst [vmem:[%s207 + $0x68] sm:$0xff] %v736
        %801 = vst [vmem:[%s207 + $0x70] sm:$0xff] %v737
        %802 = vst [vmem:[%s207 + $0x78] sm:$0xff] %v738
        %803 = vst [vmem:[%s207 + $0x80] sm:$0xff] %v739
        %804 = vst [vmem:[%s207 + $0x88] sm:$0xff] %v740
        %805 = vst [vmem:[%s207 + $0x90] sm:$0xff] %v741
        %806 = vst [vmem:[%s207 + $0x98] sm:$0xff] %v742
        %807 = vst [vmem:[%s207 + $0xa0] sm:$0xff] %v743
        %808 = vst [vmem:[%s207 + $0xa8] sm:$0xff] %v744
        %809 = vst [vmem:[%s207 + $0xb0] sm:$0xff] %v745
        %810 = vst [vmem:[%s207 + $0xb8] sm:$0xff] %v746
        %811 = vst [vmem:[%s207 + $0xc0] sm:$0xff] %v747
        %812 = vst [vmem:[%s207 + $0xc8] sm:$0xff] %v748
        %813 = vst [vmem:[%s207 + $0xd0] sm:$0xff] %v749
        %814 = vst [vmem:[%s207 + $0xd8] sm:$0xff] %v750
        %815 = vst [vmem:[%s207 + $0xe0] sm:$0xff] %v751
        %816 = vst [vmem:[%s207 + $0xe8] sm:$0xff] %v752
        %817 = vst [vmem:[%s207 + $0xf0] sm:$0xff] %v753
        %818 = vst [vmem:[%s207 + $0xf8] sm:$0xff] %v754
        %819 = vst [vmem:[%s207 + $0x100] sm:$0xff] %v755
        %820 = vst [vmem:[%s207 + $0x108] sm:$0xff] %v756
        %821 = vst [vmem:[%s207 + $0x110] sm:$0xff] %v757
        %822 = vst [vmem:[%s207 + $0x118] sm:$0xff] %v758
        %823 = vst [vmem:[%s207 + $0x120] sm:$0xff] %v759
        %824 = vst [vmem:[%s207 + $0x128] sm:$0xff] %v760
        %825 = vst [vmem:[%s207 + $0x130] sm:$0xff] %v761
        %826 = vst [vmem:[%s207 + $0x138] sm:$0xff] %v762
        %827 = vst [vmem:[%s207 + $0x140] sm:$0xff] %v763
        %828 = vst [vmem:[%s207 + $0x148] sm:$0xff] %v764
        %829 = vst [vmem:[%s207 + $0x150] sm:$0xff] %v765
        %830 = vst [vmem:[%s207 + $0x158] sm:$0xff] %v766
        %831 = vst [vmem:[%s207 + $0x160] sm:$0xff] %v767
        %832 = vst [vmem:[%s207 + $0x168] sm:$0xff] %v768
        %833 = vst [vmem:[%s207 + $0x170] sm:$0xff] %v769
        %834 = vst [vmem:[%s207 + $0x178] sm:$0xff] %v770
        %835 = vst [vmem:[%s207 + $0x180] sm:$0xff] %v771
        %836 = vst [vmem:[%s207 + $0x188] sm:$0xff] %v772
        %837 = vst [vmem:[%s207 + $0x190] sm:$0xff] %v773
        %838 = vst [vmem:[%s207 + $0x198] sm:$0xff] %v774
        %839 = vst [vmem:[%s207 + $0x1a0] sm:$0xff] %v775
        %840 = vst [vmem:[%s207 + $0x1a8] sm:$0xff] %v776
        %841 = vst [vmem:[%s207 + $0x1b0] sm:$0xff] %v777
        %842 = vst [vmem:[%s207 + $0x1b8] sm:$0xff] %v778
        %843 = vst [vmem:[%s207 + $0x1c0] sm:$0xff] %v779
        %844 = vst [vmem:[%s207 + $0x1c8] sm:$0xff] %v780
        %845 = vst [vmem:[%s207 + $0x1d0] sm:$0xff] %v781
        %846 = vst [vmem:[%s207 + $0x1d8] sm:$0xff] %v782
        %847 = vst [vmem:[%s207 + $0x1e0] sm:$0xff] %v783
        %848 = vst [vmem:[%s207 + $0x1e8] sm:$0xff] %v784
        %849 = vst [vmem:[%s207 + $0x1f0] sm:$0xff] %v785
        %850 = vst [vmem:[%s207 + $0x1f8] sm:$0xff] %v786
        %s851 = sand.u32 %s82, 1
        %s852 = scalar_lea.sflag [#allocation4], %s851
        %s853 = sand.u32 %s82, 1
        %s854 = smul.addr %s853, 512
        %s855 = scalar_lea.vmem [#allocation7], %s854
        // Predicated region
        $region37: #{tpu_custom_call.1} parent=27 // pred_check
          %p856 = pneg %p92
        $region38: #{tpu_custom_call.1} parent=27 // pred_check_branch
          %858 = sbr.rel (%p856) target = $region40
        $region39: #{tpu_custom_call.1} parent=27 // pred_region
          %s859 = smul.u32 16, %s22
          %861 = vsyncadd %s852, 0
          %s862 = smul.addr %s859, 4
          %s863 = smul.addr %s862, 8
          %s864 = scalar_lea.hbm %s2, %s863
          %s865 = sshll.u32 %s855, 4
          %s866 = int_to_ptr.vmem [resolvable:$true] %s865
          %s867 = sshll.u32 %s864, 4
          %s868 = int_to_ptr.hbm [resolvable:$true] %s867
          %873 = dma.vmem_to_hbm [thread:$0]  %s866, 8192, %s868, %s852, 512, 512, 32
        $region40: #{tpu_custom_call.1} parent=27 // pred_fallthru
          _
      $region28: #{tpu_custom_call.1} parent=5 // pred_fallthru
        _
      %p874 = scmp.le.s32.totalorder 2, %s17
      // Predicated region
      $region41: #{tpu_custom_call.1} parent=5 // pred_check
        %p875 = pneg %p874
      $region42: #{tpu_custom_call.1} parent=5 // pred_check_branch
        %877 = sbr.rel (%p875) target = $region44
      $region43: #{tpu_custom_call.1} parent=5 // pred_region
        %s878 = ssub.s32 %s17, 2
        // Predicated region
        $region45: #{tpu_custom_call.1} parent=43 // pred_check
          %p879 = pneg %p98
        $region46: #{tpu_custom_call.1} parent=43 // pred_check_branch
          %881 = sbr.rel (%p879) target = $region48
        $region47: #{tpu_custom_call.1} parent=43 // pred_region
          %s882 = sand.u32 %s83, 1
          %s883 = scalar_lea.sflag [#allocation4], %s882
          %s884 = sand.u32 %s83, 1
          %s885 = smul.addr %s884, 512
          %s886 = scalar_lea.vmem [#allocation7], %s885
          %888 = dma.done %s883, 8192
        $region48: #{tpu_custom_call.1} parent=43 // pred_fallthru
          _
      $region44: #{tpu_custom_call.1} parent=5 // pred_fallthru
        _
    $region6: #{tpu_custom_call.1} parent=1 // loop_footer
      %s21 = sadd.s32 1, %s17
    $region7: #{tpu_custom_call.1} parent=1 // loop_footer_branch
      %16 = sbr.rel target = $region3
    $region8: #{tpu_custom_call.1} parent=1 // loop_exit
      _
    %889 = vsyncpa [#allocation3], 1
    %s890 = scalar_lea.sflag [#allocation3], 1
    %891 = vsyncpa %s890, 1
    %892 = vsyncpa [#allocation6], 1
    %s893 = scalar_lea.sflag [#allocation6], 1
    %894 = vsyncpa %s893, 1
    %895 = vsyncpa [#allocation4], 1
    %s896 = scalar_lea.sflag [#allocation4], 1
    %897 = vsyncpa %s896, 1

</llo_original>
